<compile_context>
chip_gen: v6e
topology: v6e:2x2x1
jax: 0.10.0
libtpu: 0.0.40
codegen_flags: <defaults>
</compile_context>

<pallas_src>
import functools
import math

import jax
import jax.numpy as jnp
from jax.experimental import pallas as pl
from jax.experimental.pallas import tpu as pltpu

_LANE = 128
_ROW_TILES = (1024, 512, 256, 128, 64, 32, 16, 8)   # node-row tiles (mult. of 8, prefer 256-aligned)
_K_TILES = (2048, 1024, 512, 256, 128)               # node-contraction tiles (lane-aligned)


def _vmem_capacity_bytes():
    """Physical per-core VMEM (generation-aware); conservative 64 MiB (v7x) fallback."""
    try:
        cap = int(pltpu.get_tpu_info().vmem_capacity_bytes)
        if cap > 0:
            return cap
    except Exception:
        pass
    return 64 * 1024 * 1024


def _largest(tiles, fits):
    for t in tiles:
        if fits(t):
            return t
    return None


# -----------------------------------------------------------------------------
# Kernel bodies
# -----------------------------------------------------------------------------

def _xw_kernel(x_ref, w_ref, o_ref):
    # support_tile = x_tile @ W (f32 accumulation on the MXU)
    o_ref[...] = jnp.dot(
        x_ref[...], w_ref[...], preferred_element_type=jnp.float32
    ).astype(o_ref.dtype)


def _prop_xw_kernel(x_ref, w_ref, adj_ref, b_ref, o_ref):
    # out_tile = (adj_tile @ x) @ W + bias     (adj-first order, Fin small)
    ax = jnp.dot(adj_ref[...], x_ref[...], preferred_element_type=jnp.float32)
    out = jnp.dot(ax.astype(w_ref.dtype), w_ref[...], preferred_element_type=jnp.float32)
    o_ref[...] = (out + b_ref[...]).astype(o_ref.dtype)


def _prop_s_kernel(s_ref, adj_ref, b_ref, o_ref):
    # out_tile = adj_tile @ support + bias     (support precomputed)
    out = jnp.dot(adj_ref[...], s_ref[...], preferred_element_type=jnp.float32)
    o_ref[...] = (out + b_ref[...]).astype(o_ref.dtype)


def _prop_xw_kt_kernel(x_ref, w_ref, adj_ref, b_ref, o_ref, acc_ref):
    # K-tiled node contraction: acc += adj_ktile @ x_ktile; finalize (@W + bias) at k==last.
    @pl.when(pl.program_id(2) == 0)
    def _():
        acc_ref[...] = jnp.zeros_like(acc_ref)

    acc_ref[...] += jnp.dot(adj_ref[...], x_ref[...], preferred_element_type=jnp.float32)

    @pl.when(pl.program_id(2) == pl.num_programs(2) - 1)
    def _():
        out = jnp.dot(acc_ref[...].astype(w_ref.dtype), w_ref[...],
                      preferred_element_type=jnp.float32)
        o_ref[...] = (out + b_ref[...]).astype(o_ref.dtype)


def _prop_s_kt_kernel(s_ref, adj_ref, b_ref, o_ref, acc_ref):
    # K-tiled node contraction over a precomputed support slab.
    @pl.when(pl.program_id(2) == 0)
    def _():
        acc_ref[...] = jnp.zeros_like(acc_ref)

    acc_ref[...] += jnp.dot(adj_ref[...], s_ref[...], preferred_element_type=jnp.float32)

    @pl.when(pl.program_id(2) == pl.num_programs(2) - 1)
    def _():
        o_ref[...] = (acc_ref[...] + b_ref[...]).astype(o_ref.dtype)


# -----------------------------------------------------------------------------
# pallas_call builders
# -----------------------------------------------------------------------------

def _support_matmul(x, w, vmem_cap):
    """support[b] = x[b] @ w via a small tiled Pallas matmul (f32 accumulation)."""
    B, N, Fin = x.shape
    Fp = w.shape[1]
    isz = x.dtype.itemsize
    budget = int(0.3 * vmem_cap)
    tiles = [t for t in _ROW_TILES if N % t == 0]
    tm = _largest(tiles, lambda t: 2 * t * (Fin + Fp) * isz <= budget)
    if tm is None:
        tm = tiles[-1] if tiles else N
    # TODO(synk): K-tile Fin here as well if the (Fin, Fp) W itself outgrows VMEM.
    vmem_need = 2 * tm * Fin * isz + 2 * Fin * Fp * w.dtype.itemsize + 2 * tm * Fp * isz
    vmem_limit = min(max(vmem_need + (4 << 20), 32 << 20), vmem_cap)

    return pl.pallas_call(
        _xw_kernel,
        out_shape=jax.ShapeDtypeStruct((B, N, Fp), x.dtype),
        grid_spec=pltpu.PrefetchScalarGridSpec(
            num_scalar_prefetch=0,
            grid=(B, N // tm),
            in_specs=[
                pl.BlockSpec((pl.Squeezed(), tm, Fin), lambda b, r: (b, r, 0)),
                pl.BlockSpec((Fin, Fp), lambda b, r: (0, 0)),
            ],
            out_specs=pl.BlockSpec((pl.Squeezed(), tm, Fp), lambda b, r: (b, r, 0)),
        ),
        compiler_params=pltpu.CompilerParams(
            dimension_semantics=("parallel", "parallel"),
            vmem_limit_bytes=int(vmem_limit),
        ),
        cost_estimate=pl.CostEstimate(
            flops=int(2 * B * N * Fin * Fp),
            transcendentals=0,
            bytes_accessed=int(B * N * Fin * isz + Fin * Fp * w.dtype.itemsize
                               + B * N * Fp * isz),
        ),
    )(x, w)


def _propagate_dense(feat, adj, w, bias2d, out_dtype, tn, vmem_cap):
    """out[b] = adj @ feat[b] (@ w) + bias; node rows tiled by tn, full-N contraction."""
    B, N, Ff = feat.shape
    Fp = bias2d.shape[1]
    num_rows = N // tn
    feat_isz = feat.dtype.itemsize
    adj_isz = adj.dtype.itemsize
    out_isz = jnp.dtype(out_dtype).itemsize

    # Row-tile-outer / batch-inner ordering keeps the adj stripe's block index constant
    # across the inner axis, so adj is streamed from HBM once instead of B times.  Worth
    # it when the extra feature-slab re-reads are cheaper than the saved adj traffic,
    # i.e. when the streamed feature width is smaller than the row tile.
    adj_reuse = (B > 1) and (num_rows > 1) and (Ff < tn)

    if adj_reuse:
        grid = (num_rows, B)
        feat_map = lambda r, b: (b, 0, 0)
        fixed_map = lambda r, b: (0, 0)
        adj_map = lambda r, b: (r, 0)
        out_map = lambda r, b: (b, r, 0)
        adj_reads, feat_reads = 1, num_rows
    else:
        grid = (B, num_rows)
        feat_map = lambda b, r: (b, 0, 0)
        fixed_map = lambda b, r: (0, 0)
        adj_map = lambda b, r: (r, 0)
        out_map = lambda b, r: (b, r, 0)
        adj_reads, feat_reads = B, 1

    in_specs = [pl.BlockSpec((pl.Squeezed(), N, Ff), feat_map)]
    operands = [feat]
    if w is not None:
        in_specs.append(pl.BlockSpec(w.shape, fixed_map))
        operands.append(w)
    in_specs.append(pl.BlockSpec((tn, N), adj_map))
    operands.append(adj)
    in_specs.append(pl.BlockSpec((1, Fp), fixed_map))
    operands.append(bias2d)

    kernel = _prop_xw_kernel if w is not None else _prop_s_kernel

    flops = 2 * B * N * N * Ff + (2 * B * N * Ff * Fp if w is not None else 0)
    bytes_accessed = (
        feat_reads * B * N * Ff * feat_isz
        + adj_reads * N * N * adj_isz
        + (w.size * w.dtype.itemsize if w is not None else 0)
        + Fp * 4
        + B * N * Fp * out_isz
    )
    vmem_need = (
        2 * N * Ff * feat_isz
        + 2 * tn * N * adj_isz
        + (2 * w.size * w.dtype.itemsize if w is not None else 0)
        + 2 * Fp * 4
        + 2 * tn * Fp * out_isz
    )
    vmem_limit = min(max(vmem_need + (4 << 20), 32 << 20), vmem_cap)

    return pl.pallas_call(
        kernel,
        out_shape=jax.ShapeDtypeStruct((B, N, Fp), out_dtype),
        grid_spec=pltpu.PrefetchScalarGridSpec(
            num_scalar_prefetch=0,
            grid=grid,
            in_specs=in_specs,
            out_specs=pl.BlockSpec((pl.Squeezed(), tn, Fp), out_map),
        ),
        compiler_params=pltpu.CompilerParams(
            dimension_semantics=("parallel", "parallel"),
            vmem_limit_bytes=int(vmem_limit),
        ),
        cost_estimate=pl.CostEstimate(
            flops=int(flops), transcendentals=0, bytes_accessed=int(bytes_accessed)
        ),
    )(*operands)


def _propagate_ktiled(feat, adj, w, bias2d, out_dtype, tn, tk, vmem_cap):
    """K-tiled node contraction: grid (B, rows, kblocks), f32 row-tile accumulator."""
    B, N, Ff = feat.shape
    Fp = bias2d.shape[1]
    num_rows, num_k = N // tn, N // tk
    feat_isz = feat.dtype.itemsize
    adj_isz = adj.dtype.itemsize
    out_isz = jnp.dtype(out_dtype).itemsize

    in_specs = [pl.BlockSpec((pl.Squeezed(), tk, Ff), lambda b, r, k: (b, k, 0))]
    operands = [feat]
    if w is not None:
        in_specs.append(pl.BlockSpec(w.shape, lambda b, r, k: (0, 0)))
        operands.append(w)
    in_specs.append(pl.BlockSpec((tn, tk), lambda b, r, k: (r, k)))
    operands.append(adj)
    in_specs.append(pl.BlockSpec((1, Fp), lambda b, r, k: (0, 0)))
    operands.append(bias2d)

    kernel = _prop_xw_kt_kernel if w is not None else _prop_s_kt_kernel

    # TODO(synk): in this regime adj is still streamed once per batch; reusing it across
    #   the batch axis would need a (B, tn, Ff) accumulator with a batch-innermost grid.
    flops = 2 * B * N * N * Ff + (2 * B * N * Ff * Fp if w is not None else 0)
    bytes_accessed = (
        num_rows * B * N * Ff * feat_isz
        + B * N * N * adj_isz
        + (w.size * w.dtype.itemsize if w is not None else 0)
        + Fp * 4
        + B * N * Fp * out_isz
    )
    vmem_need = (
        2 * tk * Ff * feat_isz
        + 2 * tn * tk * adj_isz
        + (2 * w.size * w.dtype.itemsize if w is not None else 0)
        + 2 * Fp * 4
        + 2 * tn * Fp * out_isz
        + tn * Ff * 4
    )
    vmem_limit = min(max(vmem_need + (4 << 20), 32 << 20), vmem_cap)

    return pl.pallas_call(
        kernel,
        out_shape=jax.ShapeDtypeStruct((B, N, Fp), out_dtype),
        grid_spec=pltpu.PrefetchScalarGridSpec(
            num_scalar_prefetch=0,
            grid=(B, num_rows, num_k),
            in_specs=in_specs,
            out_specs=pl.BlockSpec((pl.Squeezed(), tn, Fp), lambda b, r, k: (b, r, 0)),
            scratch_shapes=[pltpu.VMEM((tn, Ff), jnp.float32)],
        ),
        compiler_params=pltpu.CompilerParams(
            dimension_semantics=("parallel", "parallel", "arbitrary"),
            vmem_limit_bytes=int(vmem_limit),
        ),
        cost_estimate=pl.CostEstimate(
            flops=int(flops), transcendentals=0, bytes_accessed=int(bytes_accessed)
        ),
    )(*operands)


# -----------------------------------------------------------------------------
# Public wrapper
# -----------------------------------------------------------------------------

@functools.partial(jax.jit,
                   static_argnames=("compute_dtype", "force_k_tiling", "max_row_tile"))
def gcn_forward(x, adj, weight, bias, compute_dtype=None, force_k_tiling=False,
                max_row_tile=None):
    """output = adj @ (x @ weight) + bias, batched over x's leading axis.

    compute_dtype: optional streaming/MXU dtype (e.g. jnp.bfloat16); accumulation stays
      f32 and the output keeps x's dtype.  None -> keep the input dtype (faithful to the
      PyTorch module's f32 math).
    force_k_tiling / max_row_tile: tuning / test knobs for the tiling strategy.
    """
    B, N, Fin = x.shape
    Fout = weight.shape[1]
    out_dtype = x.dtype
    cdt = jnp.dtype(compute_dtype) if compute_dtype is not None else jnp.dtype(x.dtype)

    # Cast the streamed operands once (bf16 halves the dominant adj HBM stream and puts
    # the matmuls on the native bf16 MXU path); bias stays f32 for the epilogue add.
    x_c = x.astype(cdt)
    adj_c = adj.astype(cdt)
    w_c = weight.astype(cdt)
    bias_f32 = bias.astype(jnp.float32)

    # Lane-dense output stores: pad Fout < 128 up to the 128-lane width with zero
    # columns (W) / zeros (bias); the padding is sliced off after the kernel.
    Fp = Fout if Fout >= _LANE else _LANE
    if Fp != Fout:
        w_c = jnp.pad(w_c, ((0, 0), (0, Fp - Fout)))
        bias_f32 = jnp.pad(bias_f32, (0, Fp - Fout))
    bias2d = bias_f32.reshape(1, Fp)

    vmem_cap = _vmem_capacity_bytes()
    adj_isz = adj_c.dtype.itemsize
    feat_isz = jnp.dtype(cdt).itemsize

    # Matmul-order selection.  With Fin <= 128 the MXU pads the contraction to a full
    # pass anyway, so the scratch-free (adj @ x) @ W order wins; otherwise pick the
    # order with the cheaper N^2 term and precompute support = x @ W with its own small
    # Pallas matmul (no per-batch pipeline bubble, no full-lifetime scratch).
    adj_first = (Fin <= _LANE) or (Fin <= Fp)
    if adj_first:
        feat, w_for_prop, Ff = x_c, w_c, Fin
    else:
        feat, w_for_prop, Ff = _support_matmul(x_c, w_c, vmem_cap), None, Fp

    stripe_budget = int(0.35 * vmem_cap)   # double-buffered (tn, N) adj stripe
    slab_budget = int(0.35 * vmem_cap)     # double-buffered (N, Ff) feature slab

    row_tiles = [t for t in _ROW_TILES if N % t == 0]
    if max_row_tile is not None:
        row_tiles = [t for t in row_tiles if t <= max_row_tile] or row_tiles
    k_tiles = [t for t in _K_TILES if N % t == 0 and t < N]

    if not row_tiles:
        # Irregular N (no multiple-of-8 divisor): one full-extent block per batch.
        # TODO(synk): ragged node tiling (cdiv grid + masked edge rows) for huge odd N.
        tn, tk, use_k = N, None, False
    else:
        tn_dense = _largest(row_tiles, lambda t: 2 * t * N * adj_isz <= stripe_budget)
        slab_fits = 2 * N * Ff * feat_isz <= slab_budget
        use_k = bool(k_tiles) and (force_k_tiling or tn_dense is None or not slab_fits)
        if use_k:
            tk = _largest(k_tiles, lambda t: 2 * t * Ff * feat_isz <= slab_budget)
            tk = tk or k_tiles[-1]
            cand = row_tiles
            if force_k_tiling:
                cand = [t for t in row_tiles if t < N] or row_tiles
            tn = _largest(
                cand,
                lambda t: 2 * t * tk * adj_isz + t * Ff * 4 + 2 * t * Fp * 4 <= stripe_budget,
            )
            tn = tn or cand[-1]
        else:
            tn, tk = (tn_dense or row_tiles[-1]), None

    if use_k:
        out_p = _propagate_ktiled(feat, adj_c, w_for_prop, bias2d, out_dtype,
                                  tn, tk, vmem_cap)
    else:
        out_p = _propagate_dense(feat, adj_c, w_for_prop, bias2d, out_dtype,
                                 tn, vmem_cap)

    return out_p if Fp == Fout else out_p[:, :, :Fout]


def init_gcn_params(key, in_features, out_features, dtype=jnp.float32):
    # Matches GCN.reset_parameters:
    #   stdv = 0.6 / sqrt(out_features + in_features); weight ~ U(-stdv, stdv); bias = 0.
    stdv = 0.6 / math.sqrt(out_features + in_features)
    weight = jax.random.uniform(
        key, (in_features, out_features), dtype=dtype, minval=-stdv, maxval=stdv
    )
    bias = jnp.zeros((out_features,), dtype=dtype)
    return weight, bias


if __name__ == "__main__":

    def reference(x, adj, weight, bias):
        hi = jax.lax.Precision.HIGHEST
        support = jnp.einsum("bnf,fo->bno", x, weight, precision=hi)
        return jnp.einsum("nm,bmo->bno", adj, support, precision=hi) + bias

    def run_case(key, B, N, Fin, Fout, compute_dtype=None, force_k_tiling=False,
                 max_row_tile=None, atol=1e-3, rtol=1e-3):
        k_w, k_x, k_a, k_b = jax.random.split(key, 4)
        weight, _ = init_gcn_params(k_w, Fin, Fout)
        # Non-zero bias so the bias-add path is actually exercised.
        bias = 0.1 * jax.random.normal(k_b, (Fout,), dtype=jnp.float32)
        x = jax.random.normal(k_x, (B, N, Fin), dtype=jnp.float32)
        a = jax.random.uniform(k_a, (N, N), dtype=jnp.float32)
        adj = (a + a.T) * 0.5  # symmetric adjacency (any (N, N) works)

        out = gcn_forward(x, adj, weight, bias, compute_dtype=compute_dtype,
                          force_k_tiling=force_k_tiling, max_row_tile=max_row_tile)
        jax.block_until_ready(out)

        ref = reference(x, adj, weight, bias)
        assert out.shape == (B, N, Fout)
        assert out.dtype == x.dtype
        assert jnp.allclose(out, ref, atol=atol, rtol=rtol), (
            f"mismatch B={B} N={N} Fin={Fin} Fout={Fout} "
            f"cdt={compute_dtype} kt={force_k_tiling}"
        )

    key = jax.random.PRNGKey(0)
    keys = jax.random.split(key, 6)
    # Fin <= 128 -> adj-first dense kernel, lane-padded Fout.
    run_case(keys[0], B=2, N=16, Fin=4, Fout=32)
    # Fin > 128 > Fout -> support precompute kernel + adj @ support propagation.
    run_case(keys[1], B=2, N=16, Fin=192, Fout=8)
    # bf16 MXU / halved-adj-stream path (f32 accumulation), looser tolerance.
    run_case(keys[2], B=2, N=16, Fin=4, Fout=32, compute_dtype=jnp.bfloat16,
             atol=5e-2, rtol=5e-2)
    # adj-reuse grid ordering (row-tile outer, batch inner; adj resident across batch).
    run_case(keys[3], B=2, N=256, Fin=32, Fout=8, max_row_tile=128)
    # K-tiled adj-first path (f32 accumulator across the node contraction).
    run_case(keys[4], B=2, N=256, Fin=32, Fout=8, force_k_tiling=True)
    # K-tiled support path.
    run_case(keys[5], B=2, N=256, Fin=192, Fout=8, force_k_tiling=True)

    print("KERNEL_OK")
</pallas_src>

<mosaic_0001>
module attributes {stable_mosaic.version = 11 : i64} {
  func.func @_prop_xw_kernel(%arg0: i32, %arg1: i32, %arg2: memref<1x16x4xf32, #tpu.memory_space<vmem>>, %arg3: memref<4x128xf32, #tpu.memory_space<vmem>>, %arg4: memref<16x16xf32, #tpu.memory_space<vmem>>, %arg5: memref<1x128xf32, #tpu.memory_space<vmem>>, %arg6: memref<1x16x128xf32, #tpu.memory_space<vmem>>) attributes {dimension_semantics = [#tpu.dimension_semantics<parallel>, #tpu.dimension_semantics<parallel>], iteration_bounds = array<i64: 2, 1>, scalar_prefetch = 0 : i64, scratch_operands = 0 : i64, tpu.core_type = #tpu.core_type<tc>, window_params = [{transform_indices = @transform_0, window_bounds = array<i64: 1, 16, 4>}, {pipeline_mode = #tpu.pipeline_mode<synchronous>, transform_indices = @transform_1, window_bounds = array<i64: 4, 128>}, {transform_indices = @transform_2, window_bounds = array<i64: 16, 16>}, {pipeline_mode = #tpu.pipeline_mode<synchronous>, transform_indices = @transform_3, window_bounds = array<i64: 1, 128>}, {transform_indices = @transform_4, window_bounds = array<i64: 1, 16, 128>}]} {
    %c0 = arith.constant 0 : index
    %c0_0 = arith.constant 0 : index
    %0 = vector.load %arg4[%c0, %c0_0] : memref<16x16xf32, #tpu.memory_space<vmem>>, vector<16x16xf32>
    %c0_1 = arith.constant 0 : index
    %c0_2 = arith.constant 0 : index
    %c0_3 = arith.constant 0 : index
    %1 = vector.load %arg2[%c0_1, %c0_2, %c0_3] : memref<1x16x4xf32, #tpu.memory_space<vmem>>, vector<1x16x4xf32>
    %2 = vector.shape_cast %1 : vector<1x16x4xf32> to vector<16x4xf32>
    %cst = arith.constant dense<0.000000e+00> : vector<16x4xf32>
    %3 = tpu.matmul %0, %2, %cst {dimension_numbers = #tpu.dot_dimension_numbers<[1], [0], [0], [1], [0, 0, 1, 1], [], []>} : vector<16x16xf32>, vector<16x4xf32>, vector<16x4xf32> -> vector<16x4xf32>
    %c0_4 = arith.constant 0 : index
    %c0_5 = arith.constant 0 : index
    %4 = vector.load %arg3[%c0_4, %c0_5] : memref<4x128xf32, #tpu.memory_space<vmem>>, vector<4x128xf32>
    %cst_6 = arith.constant dense<0.000000e+00> : vector<16x128xf32>
    %5 = tpu.matmul %3, %4, %cst_6 {dimension_numbers = #tpu.dot_dimension_numbers<[1], [0], [0], [1], [0, 0, 1, 1], [], []>} : vector<16x4xf32>, vector<4x128xf32>, vector<16x128xf32> -> vector<16x128xf32>
    %c0_7 = arith.constant 0 : index
    %c0_8 = arith.constant 0 : index
    %6 = vector.load %arg5[%c0_7, %c0_8] : memref<1x128xf32, #tpu.memory_space<vmem>>, vector<1x128xf32>
    %7 = vector.broadcast %6 : vector<1x128xf32> to vector<16x128xf32>
    %8 = arith.addf %5, %7 : vector<16x128xf32>
    %c0_9 = arith.constant 0 : index
    %c0_10 = arith.constant 0 : index
    %c0_11 = arith.constant 0 : index
    %9 = vector.load %arg6[%c0_9, %c0_10, %c0_11] : memref<1x16x128xf32, #tpu.memory_space<vmem>>, vector<1x16x128xf32>
    %10 = vector.shape_cast %9 : vector<1x16x128xf32> to vector<16x128xf32>
    %11 = vector.shape_cast %8 : vector<16x128xf32> to vector<1x16x128xf32>
    tpu.vector_store %arg6[%c0_9, %c0_10, %c0_11], %11 {strides = array<i32>} : memref<1x16x128xf32, #tpu.memory_space<vmem>>, vector<1x16x128xf32>,
    return
  }
  func.func @transform_0(%arg0: i32, %arg1: i32) -> (i32, i32, i32) {
    %c0_i32 = arith.constant 0 : i32
    %c0_i32_0 = arith.constant 0 : i32
    %c0_i32_1 = arith.constant 0 : i32
    return %arg0, %c0_i32, %c0_i32_0 : i32, i32, i32
  }
  func.func @transform_1(%arg0: i32, %arg1: i32) -> (i32, i32) {
    %c0_i32 = arith.constant 0 : i32
    %c0_i32_0 = arith.constant 0 : i32
    %c0_i32_1 = arith.constant 0 : i32
    return %c0_i32, %c0_i32_0 : i32, i32
  }
  func.func @transform_2(%arg0: i32, %arg1: i32) -> (i32, i32) {
    %c0_i32 = arith.constant 0 : i32
    %c0_i32_0 = arith.constant 0 : i32
    return %arg1, %c0_i32 : i32, i32
  }
  func.func @transform_3(%arg0: i32, %arg1: i32) -> (i32, i32) {
    %c0_i32 = arith.constant 0 : i32
    %c0_i32_0 = arith.constant 0 : i32
    %c0_i32_1 = arith.constant 0 : i32
    return %c0_i32, %c0_i32_0 : i32, i32
  }
  func.func @transform_4(%arg0: i32, %arg1: i32) -> (i32, i32, i32) {
    %c0_i32 = arith.constant 0 : i32
    %c0_i32_0 = arith.constant 0 : i32
    return %arg0, %arg1, %c0_i32 : i32, i32, i32
  }
}

</mosaic_0001>

<llo_original>
// kernel: gcn_forward.1
$region0: #{gcn_forward.1}
  #allocation0 [shape = 'u32[]', space=smem, size = 0x4, offset = 0x4, fixed_abs, tag = 'smem constant byte address 0x4 - core index']
  #allocation1 [shape = 'u32[144,128]{1,0:T(1,128)}', space=vmem, size = 0x12000, scoped, tag = 'internal scratch']
  %s0 = inlined_call_operand.vmem [shape: f32[2,16,4], index: 0, kind: input, shape index: {}]
  %s1 = inlined_call_operand.vmem [shape: f32[4,128], index: 1, kind: input, shape index: {}]
  %s2 = inlined_call_operand.vmem [shape: f32[16,16], index: 2, kind: input, shape index: {}]
  %s3 = inlined_call_operand.vmem [shape: f32[1,128], index: 3, kind: input, shape index: {}]
  %s4 = inlined_call_operand.hbm [shape: f32[2,16,128], index: 4, kind: output, shape index: {}]
  %s5 = sld [smem:[#allocation0]]
  $region49: #{gcn_forward.1} parent=0
    _
  %s7 = ssub.s32 1, %s5
  %s8 = scalar_select 0, %s7, %s5
  $region1: #{gcn_forward.1} parent=0
    #allocation2 [shape = 'u8[16384]{0}', space=vmem, size = 0x4000, scoped, tag = 'output window, operand 0']
    #allocation3 [shape = 's32[2]{0}', space=sflag, size = 0x8, scoped, tag = 'scoped memory for gcn_forward.1']
    %9 = vsyncpa [#allocation3], 0
    %s10 = scalar_lea.sflag [#allocation3], 1
    %11 = vsyncpa %s10, 0
    loop: start=0, step=1, limit=4
    $region2: #{gcn_forward.1} parent=1 // loop_pre_header
      _
    $region3: #{gcn_forward.1} parent=1 // loop_header
      %s13 = sphi 0, %s17
      %p14 = scmp.ge.s32.totalorder %s13, 4
      %s20 = sphi 0, %s32
      %s21 = sphi 0, %s28
      %s22 = sphi 0, %s20
      %s23 = sphi 0, %s21
      %s24 = sphi 0, %s22
      %s25 = sphi 0, %s23
      %s35 = sphi 0, %s37
      %s38 = sphi 0, %s35
      %s39 = sphi 0, %s38
      %s55 = sphi 0, %s39
      %s59 = sphi 0, %s59
      %s61 = sphi 0, %s59
      %s62 = sphi 0, %s61
      %s76 = sphi 0, %s62
      %s82 = sphi 0, %s84
      %s85 = sphi 0, %s82
      %s86 = sphi 0, %s85
      %s102 = sphi 0, %s86
      %s106 = sphi 0, %s106
      %s108 = sphi 0, %s106
      %s109 = sphi 0, %s108
      %s123 = sphi 0, %s109
      %s131 = sphi 0, %s133
      %s134 = sphi 0, %s131
      %s135 = sphi 0, %s134
      %s151 = sphi 0, %s135
    $region4: #{gcn_forward.1} parent=1 // loop_header_branch
      %16 = sbr.rel (%p14) target = $region8
    $region5: #{gcn_forward.1} parent=1 // loop_body
      %s18 = ssub.s32 %s13, 1
      %s19 = ssub.s32 %s13, 2
      %s26 = sadd.s32 1, %s21
      %p27 = scmp.ge.s32.totalorder %s26, 1
      %s28 = scalar_select %p27, 0, %s26
      %s29 = sadd.s32 1, %s20
      %s30 = scalar_select %p27, %s29, %s20
      %p31 = scmp.ge.s32.totalorder %s30, 2
      %s32 = scalar_select %p31, 0, %s30
      %s33 = ssub.s32 %s20, %s32
      %p34 = scmp.eq.s32.totalorder %s33, 0
      %s36 = sadd.s32 %s35, 1
      %s37 = scalar_select %p34, %s35, %s36
      %p40 = pneg %p34
      %p41 = scmp.eq.s32.totalorder %s13, 1
      %p42 = por %p40, %p41
      %p43 = scmp.ne.s32.totalorder %s35, %s38
      %p44 = scmp.eq.s32.totalorder %s13, 0
      %p45 = por %p43, %p44
      %p46 = scmp.ne.s32.totalorder %s35, %s38
      %p47 = scmp.eq.s32.totalorder %s18, 1
      %p48 = por %p46, %p47
      %p49 = scmp.ne.s32.totalorder %s38, %s39
      %p50 = scmp.eq.s32.totalorder %s18, 0
      %p51 = por %p49, %p50
      %p52 = scmp.ne.s32.totalorder %s38, %s39
      %p53 = scmp.eq.s32.totalorder %s19, 1
      %p54 = por %p52, %p53
      %p56 = scmp.ne.s32.totalorder %s39, %s55
      %p57 = scmp.eq.s32.totalorder %s19, 0
      %p58 = por %p56, %p57
      %s60 = sadd.s32 %s59, 1
      %p63 = scmp.eq.s32.totalorder %s13, 1
      %p64 = scmp.ne.s32.totalorder %s59, %s61
      %p65 = scmp.eq.s32.totalorder %s13, 0
      %p66 = por %p64, %p65
      %p67 = scmp.ne.s32.totalorder %s59, %s61
      %p68 = scmp.eq.s32.totalorder %s18, 1
      %p69 = por %p67, %p68
      %p70 = scmp.ne.s32.totalorder %s61, %s62
      %p71 = scmp.eq.s32.totalorder %s18, 0
      %p72 = por %p70, %p71
      %p73 = scmp.ne.s32.totalorder %s61, %s62
      %p74 = scmp.eq.s32.totalorder %s19, 1
      %p75 = por %p73, %p74
      %p77 = scmp.ne.s32.totalorder %s62, %s76
      %p78 = scmp.eq.s32.totalorder %s19, 0
      %p79 = por %p77, %p78
      %s80 = ssub.s32 %s21, %s28
      %p81 = scmp.eq.s32.totalorder %s80, 0
      %s83 = sadd.s32 %s82, 1
      %s84 = scalar_select %p81, %s82, %s83
      %p87 = pneg %p81
      %p88 = scmp.eq.s32.totalorder %s13, 1
      %p89 = por %p87, %p88
      %p90 = scmp.ne.s32.totalorder %s82, %s85
      %p91 = scmp.eq.s32.totalorder %s13, 0
      %p92 = por %p90, %p91
      %p93 = scmp.ne.s32.totalorder %s82, %s85
      %p94 = scmp.eq.s32.totalorder %s18, 1
      %p95 = por %p93, %p94
      %p96 = scmp.ne.s32.totalorder %s85, %s86
      %p97 = scmp.eq.s32.totalorder %s18, 0
      %p98 = por %p96, %p97
      %p99 = scmp.ne.s32.totalorder %s85, %s86
      %p100 = scmp.eq.s32.totalorder %s19, 1
      %p101 = por %p99, %p100
      %p103 = scmp.ne.s32.totalorder %s86, %s102
      %p104 = scmp.eq.s32.totalorder %s19, 0
      %p105 = por %p103, %p104
      %s107 = sadd.s32 %s106, 1
      %p110 = scmp.eq.s32.totalorder %s13, 1
      %p111 = scmp.ne.s32.totalorder %s106, %s108
      %p112 = scmp.eq.s32.totalorder %s13, 0
      %p113 = por %p111, %p112
      %p114 = scmp.ne.s32.totalorder %s106, %s108
      %p115 = scmp.eq.s32.totalorder %s18, 1
      %p116 = por %p114, %p115
      %p117 = scmp.ne.s32.totalorder %s108, %s109
      %p118 = scmp.eq.s32.totalorder %s18, 0
      %p119 = por %p117, %p118
      %p120 = scmp.ne.s32.totalorder %s108, %s109
      %p121 = scmp.eq.s32.totalorder %s19, 1
      %p122 = por %p120, %p121
      %p124 = scmp.ne.s32.totalorder %s109, %s123
      %p125 = scmp.eq.s32.totalorder %s19, 0
      %p126 = por %p124, %p125
      %s127 = ssub.s32 %s20, %s32
      %s128 = ssub.s32 %s21, %s28
      %s129 = sor.u32 %s127, %s128
      %p130 = scmp.eq.s32.totalorder %s129, 0
      %s132 = sadd.s32 %s131, 1
      %s133 = scalar_select %p130, %s131, %s132
      %p136 = pneg %p130
      %p137 = scmp.eq.s32.totalorder %s13, 1
      %p138 = por %p136, %p137
      %p139 = scmp.ne.s32.totalorder %s131, %s134
      %p140 = scmp.eq.s32.totalorder %s13, 0
      %p141 = por %p139, %p140
      %p142 = scmp.ne.s32.totalorder %s131, %s134
      %p143 = scmp.eq.s32.totalorder %s18, 1
      %p144 = por %p142, %p143
      %p145 = scmp.ne.s32.totalorder %s134, %s135
      %p146 = scmp.eq.s32.totalorder %s18, 0
      %p147 = por %p145, %p146
      %p148 = scmp.ne.s32.totalorder %s134, %s135
      %p149 = scmp.eq.s32.totalorder %s19, 1
      %p150 = por %p148, %p149
      %p152 = scmp.ne.s32.totalorder %s135, %s151
      %p153 = scmp.eq.s32.totalorder %s19, 0
      %p154 = por %p152, %p153
      %p155 = scmp.le.s32.totalorder 1, %s13
      %p156 = scmp.lt.s32.totalorder %s13, 3
      %p157 = pnand %p155, %p156
      %p158 = pneg %p157
      // Predicated region
      $region9: #{gcn_forward.1} parent=5 // pred_check
        _
      $region10: #{gcn_forward.1} parent=5 // pred_check_branch
        %160 = sbr.rel (%p157) target = $region12
      $region11: #{gcn_forward.1} parent=5 // pred_region
        %s161 = ssub.s32 %s13, 1
        // Predicated region
        $region13: #{gcn_forward.1} parent=11 // pred_check
          %p162 = pneg %p72
        $region14: #{gcn_forward.1} parent=11 // pred_check_branch
          %164 = sbr.rel (%p162) target = $region16
        $region15: #{gcn_forward.1} parent=11 // pred_region
          _
        $region16: #{gcn_forward.1} parent=11 // pred_fallthru
          _
        // Predicated region
        $region17: #{gcn_forward.1} parent=11 // pred_check
          %p165 = pneg %p98
        $region18: #{gcn_forward.1} parent=11 // pred_check_branch
          %167 = sbr.rel (%p165) target = $region20
        $region19: #{gcn_forward.1} parent=11 // pred_region
          %s168 = smul.u32 2, %s23
          %p169 = scmp.lt.s32.totalorder %s168, 1
          %s170 = scalar_select %p169, %s168, 1
          %s171 = smul.addr %s170, 8
          %s172 = scalar_lea.vmem %s2, %s171
          %s173 = smul.u32 2, %s23
        $region20: #{gcn_forward.1} parent=11 // pred_fallthru
          _
        // Predicated region
        $region21: #{gcn_forward.1} parent=11 // pred_check
          %p174 = pneg %p119
        $region22: #{gcn_forward.1} parent=11 // pred_check_branch
          %176 = sbr.rel (%p174) target = $region24
        $region23: #{gcn_forward.1} parent=11 // pred_region
          _
        $region24: #{gcn_forward.1} parent=11 // pred_fallthru
          _
      $region12: #{gcn_forward.1} parent=5 // pred_fallthru
        _
      %p177 = scmp.lt.s32.totalorder %s13, 2
      // Predicated region
      $region25: #{gcn_forward.1} parent=5 // pred_check
        %p178 = pneg %p177
      $region26: #{gcn_forward.1} parent=5 // pred_check_branch
        %180 = sbr.rel (%p178) target = $region28
      $region27: #{gcn_forward.1} parent=5 // pred_region
        // Predicated region
        $region29: #{gcn_forward.1} parent=27 // pred_check
          %p181 = pneg %p45
        $region30: #{gcn_forward.1} parent=27 // pred_check_branch
          %183 = sbr.rel (%p181) target = $region32
        $region31: #{gcn_forward.1} parent=27 // pred_region
          %p184 = scmp.lt.s32.totalorder %s20, 1
          %s185 = scalar_select %p184, %s20, 1
          %s186 = smul.addr %s185, 2
          %s187 = smul.addr %s186, 8
          %s188 = scalar_lea.vmem %s0, %s187
        $region32: #{gcn_forward.1} parent=27 // pred_fallthru
          _
      $region28: #{gcn_forward.1} parent=5 // pred_fallthru
        _
      %p189 = scmp.le.s32.totalorder 1, %s13
      %p190 = scmp.lt.s32.totalorder %s13, 3
      %p191 = pnand %p189, %p190
      %p192 = pneg %p191
      // Predicated region
      $region33: #{gcn_forward.1} parent=5 // pred_check
        _
      $region34: #{gcn_forward.1} parent=5 // pred_check_branch
        %194 = sbr.rel (%p191) target = $region36
      $region35: #{gcn_forward.1} parent=5 // pred_region
        %s195 = ssub.s32 %s13, 1
        %p196 = scmp.lt.s32.totalorder %s22, 1
        %s197 = scalar_select %p196, %s22, 1
        %s198 = smul.addr %s197, 2
        %s199 = smul.addr %s198, 8
        %s200 = scalar_lea.vmem %s0, %s199
        %p201 = pneg %p51
        %p202 = pneg %p48
        %p203 = pneg %p72
        %p204 = pneg %p69
        %s205 = smul.u32 2, %s23
        %p206 = scmp.lt.s32.totalorder %s205, 1
        %s207 = scalar_select %p206, %s205, 1
        %s208 = smul.addr %s207, 8
        %s209 = scalar_lea.vmem %s2, %s208
        %p210 = pneg %p98
        %p211 = pneg %p95
        %p212 = pneg %p119
        %p213 = pneg %p116
        %p214 = pneg %p147
        %p215 = pneg %p144
        %s216 = sand.u32 %s134, 1
        %s217 = scalar_lea.sflag [#allocation3], %s216
        %s218 = sand.u32 %s134, 1
        %s219 = smul.addr %s218, 16
        %s220 = scalar_lea.vmem [#allocation2], %s219
        %p221 = scmp.lt.s32.totalorder %s22, 1
        %s222 = scalar_select %p221, %s22, 1
        %s223 = smul.addr %s222, 2
        %s224 = smul.addr %s223, 8
        %s225 = scalar_lea.vmem %s0, %s224
        %s226 = smul.u32 2, %s23
        %p227 = scmp.lt.s32.totalorder %s226, 1
        %s228 = scalar_select %p227, %s226, 1
        %s229 = smul.addr %s228, 8
        %s230 = scalar_lea.vmem %s2, %s229
        %s231 = smul.u32 2, %s23
        %s232 = smul.u32 2, %s23
        %v233 = vld [vmem:[%s230] sm:$0xff]
        %v234 = vld [vmem:[%s230 + $0x8] sm:$0xff]
        %v235 = vld [vmem:[%s225] sm:$0xff]
        %v236 = vld [vmem:[%s225 + $0x8] sm:$0xff]
        %vm237 = vcmask 130048
        %v239 = vsel %vm237, %v233, 0
        %v242 = vsel %vm237, %v234, 0
        %244 = vmatprep.subr.mxu0 0.0
        %245 = vmatpush1.msra.mxu0 0.0
        %246 = vmatprep.subr.mxu0 0.0
        %247 = vmatpush1.msra.mxu0 0.0
        %248 = vmatprep.subr.mxu0 0.0
        %249 = vmatpush1.msra.mxu0 0.0
        %250 = vmatprep.subr.mxu0 0.0
        %251 = vmatpush1.msra.mxu0 0.0
        %252 = vmatprep.subr.mxu0 0.0
        %253 = vmatpush1.msra.mxu0 0.0
        %254 = vmatprep.subr.mxu0 0.0
        %255 = vmatpush1.msra.mxu0 0.0
        %256 = vmatprep.subr.mxu0 0.0
        %257 = vmatpush1.msra.mxu0 0.0
        %258 = vmatprep.subr.mxu0 0.0
        %259 = vmatpush1.msra.mxu0 0.0
        %260 = vmatprep.subr.mxu0 0.0
        %261 = vmatpush1.msra.mxu0 0.0
        %262 = vmatprep.subr.mxu0 0.0
        %263 = vmatpush1.msra.mxu0 0.0
        %264 = vmatprep.subr.mxu0 0.0
        %265 = vmatpush1.msra.mxu0 0.0
        %266 = vmatprep.subr.mxu0 0.0
        %267 = vmatpush1.msra.mxu0 0.0
        %268 = vmatprep.subr.mxu0 0.0
        %269 = vmatpush1.msra.mxu0 0.0
        %270 = vmatprep.subr.mxu0 0.0
        %271 = vmatpush1.msra.mxu0 0.0
        %272 = vmatprep.subr.mxu0 0.0
        %273 = vmatpush1.msra.mxu0 %v236
        %274 = vmatprep.subr.mxu0 0.0
        %275 = vmatpush1.msra.mxu0 %v235
        %276 = vmatprep.subr.mxu0 0.0
        %277 = vmatpush2.msra.mxu0 0.0
        %278 = vmatprep.subr.mxu0 0.0
        %279 = vmatpush2.msra.mxu0 0.0
        %280 = vmatprep.subr.mxu0 0.0
        %281 = vmatpush2.msra.mxu0 0.0
        %282 = vmatprep.subr.mxu0 0.0
        %283 = vmatpush2.msra.mxu0 0.0
        %284 = vmatprep.subr.mxu0 0.0
        %285 = vmatpush2.msra.mxu0 0.0
        %286 = vmatprep.subr.mxu0 0.0
        %287 = vmatpush2.msra.mxu0 0.0
        %288 = vmatprep.subr.mxu0 0.0
        %289 = vmatpush2.msra.mxu0 0.0
        %290 = vmatprep.subr.mxu0 0.0
        %291 = vmatpush2.msra.mxu0 0.0
        %292 = vmatprep.subr.mxu0 0.0
        %293 = vmatpush2.msra.mxu0 0.0
        %294 = vmatprep.subr.mxu0 0.0
        %295 = vmatpush2.msra.mxu0 0.0
        %296 = vmatprep.subr.mxu0 0.0
        %297 = vmatpush2.msra.mxu0 0.0
        %298 = vmatprep.subr.mxu0 0.0
        %299 = vmatpush2.msra.mxu0 0.0
        %300 = vmatprep.subr.mxu0 0.0
        %301 = vmatpush2.msra.mxu0 0.0
        %302 = vmatprep.subr.mxu0 0.0
        %303 = vmatpush2.msra.mxu0 0.0
        %304 = vmatprep.subr.mxu0 0.0
        %305 = vmatpush2.msra.mxu0 0.0
        %306 = vmatprep.subr.mxu0 0.0
        %307 = vmatpush2.msra.mxu0 0.0
        %308 = vmatprep.mubr.f32.mxu0 0.0
        %309 = vmatmul.mubr.f32.gmra.mxu0 %v239
        %v310 = vpop.f32.mrf.mxu0
        %v311 = vadd.f32 0.0, %v310
        %v312 = vpop.f32.mrf.mxu0
        %313 = vmatprep.mubr.f32.mxu0 0.0
        %314 = vmatmul.mubr.f32.gmra.mxu0 %v242
        %v315 = vpop.f32.mrf.mxu0
        %v316 = vadd.f32 0.0, %v315
        %v317 = vpop.f32.mrf.mxu0
        %318 = vdwg.mxu0
        %v319 = vld [vmem:[%s1] sm:$0xf]
        %v320 = vld [vmem:[%s3] sm:$0x1]
        %v322 = vlaneseq
        %v323 = vshrl.u32 %v322, 7
        %v324 = vsub.s32 0, %v323
        %v325 = vrot.slane %v320, %v324
        %vm327 = vcmask 31744
        %v329 = vsel %vm327, %v311, 0
        %v332 = vsel %vm327, %v316, 0
        %vm334 = vcmask 1043456
        %v336 = vsel %vm334, %v319, 0
        %338 = vmatprep.subr.mxu0 0.0
        %339 = vmatpush1.msra.mxu0 0.0
        %340 = vmatprep.subr.mxu0 0.0
        %341 = vmatpush1.msra.mxu0 0.0
        %342 = vmatprep.subr.mxu0 0.0
        %343 = vmatpush1.msra.mxu0 0.0
        %344 = vmatprep.subr.mxu0 0.0
        %345 = vmatpush1.msra.mxu0 0.0
        %346 = vmatprep.subr.mxu0 0.0
        %347 = vmatpush1.msra.mxu0 0.0
        %348 = vmatprep.subr.mxu0 0.0
        %349 = vmatpush1.msra.mxu0 0.0
        %350 = vmatprep.subr.mxu0 0.0
        %351 = vmatpush1.msra.mxu0 0.0
        %352 = vmatprep.subr.mxu0 0.0
        %353 = vmatpush1.msra.mxu0 0.0
        %354 = vmatprep.subr.mxu0 0.0
        %355 = vmatpush1.msra.mxu0 0.0
        %356 = vmatprep.subr.mxu0 0.0
        %357 = vmatpush1.msra.mxu0 0.0
        %358 = vmatprep.subr.mxu0 0.0
        %359 = vmatpush1.msra.mxu0 0.0
        %360 = vmatprep.subr.mxu0 0.0
        %361 = vmatpush1.msra.mxu0 0.0
        %362 = vmatprep.subr.mxu0 0.0
        %363 = vmatpush1.msra.mxu0 0.0
        %364 = vmatprep.subr.mxu0 0.0
        %365 = vmatpush1.msra.mxu0 0.0
        %366 = vmatprep.subr.mxu0 0.0
        %367 = vmatpush1.msra.mxu0 0.0
        %368 = vmatprep.subr.mxu0 0.0
        %369 = vmatpush1.msra.mxu0 %v336
        %370 = vmatprep.subr.mxu0 0.0
        %371 = vmatpush2.msra.mxu0 0.0
        %372 = vmatprep.subr.mxu0 0.0
        %373 = vmatpush2.msra.mxu0 0.0
        %374 = vmatprep.subr.mxu0 0.0
        %375 = vmatpush2.msra.mxu0 0.0
        %376 = vmatprep.subr.mxu0 0.0
        %377 = vmatpush2.msra.mxu0 0.0
        %378 = vmatprep.subr.mxu0 0.0
        %379 = vmatpush2.msra.mxu0 0.0
        %380 = vmatprep.subr.mxu0 0.0
        %381 = vmatpush2.msra.mxu0 0.0
        %382 = vmatprep.subr.mxu0 0.0
        %383 = vmatpush2.msra.mxu0 0.0
        %384 = vmatprep.subr.mxu0 0.0
        %385 = vmatpush2.msra.mxu0 0.0
        %386 = vmatprep.subr.mxu0 0.0
        %387 = vmatpush2.msra.mxu0 0.0
        %388 = vmatprep.subr.mxu0 0.0
        %389 = vmatpush2.msra.mxu0 0.0
        %390 = vmatprep.subr.mxu0 0.0
        %391 = vmatpush2.msra.mxu0 0.0
        %392 = vmatprep.subr.mxu0 0.0
        %393 = vmatpush2.msra.mxu0 0.0
        %394 = vmatprep.subr.mxu0 0.0
        %395 = vmatpush2.msra.mxu0 0.0
        %396 = vmatprep.subr.mxu0 0.0
        %397 = vmatpush2.msra.mxu0 0.0
        %398 = vmatprep.subr.mxu0 0.0
        %399 = vmatpush2.msra.mxu0 0.0
        %400 = vmatprep.subr.mxu0 0.0
        %401 = vmatpush2.msra.mxu0 0.0
        %402 = vmatprep.mubr.f32.mxu0 0.0
        %403 = vmatmul.mubr.f32.gmra.mxu0 %v329
        %v404 = vpop.f32.mrf.mxu0
        %v405 = vadd.f32 %v325, %v404
        %v406 = vpop.f32.mrf.mxu0
        %407 = vmatprep.mubr.f32.mxu0 0.0
        %408 = vmatmul.mubr.f32.gmra.mxu0 %v332
        %v409 = vpop.f32.mrf.mxu0
        %v410 = vadd.f32 %v325, %v409
        %v411 = vpop.f32.mrf.mxu0
        %412 = vdwg.mxu0
        %413 = vst [vmem:[%s220] sm:$0xff] %v405
        %414 = vst [vmem:[%s220 + $0x8] sm:$0xff] %v410
        %s415 = sand.u32 %s134, 1
        %s416 = scalar_lea.sflag [#allocation3], %s415
        %s417 = sand.u32 %s134, 1
        %s418 = smul.addr %s417, 16
        %s419 = scalar_lea.vmem [#allocation2], %s418
        // Predicated region
        $region37: #{gcn_forward.1} parent=35 // pred_check
          %p420 = pneg %p144
        $region38: #{gcn_forward.1} parent=35 // pred_check_branch
          %422 = sbr.rel (%p420) target = $region40
        $region39: #{gcn_forward.1} parent=35 // pred_region
          %s423 = smul.u32 2, %s23
          %s425 = ssub.s32 256, 256
          %426 = vsyncadd %s416, %s425
          %s427 = smul.addr %s22, 2
          %s428 = sadd.s32 %s423, %s427
          %s429 = smul.addr %s428, 128
          %s430 = scalar_lea.hbm %s4, %s429
          %s431 = sshll.u32 %s419, 4
          %s432 = int_to_ptr.vmem [resolvable:$true] %s431
          %437 = dma.vmem_to_hbm [thread:$0]  %s432, 256, %s430, %s416, 128, 128, 8
        $region40: #{gcn_forward.1} parent=35 // pred_fallthru
          _
      $region36: #{gcn_forward.1} parent=5 // pred_fallthru
        _
      %p438 = scmp.le.s32.totalorder 2, %s13
      // Predicated region
      $region41: #{gcn_forward.1} parent=5 // pred_check
        %p439 = pneg %p438
      $region42: #{gcn_forward.1} parent=5 // pred_check_branch
        %441 = sbr.rel (%p439) target = $region44
      $region43: #{gcn_forward.1} parent=5 // pred_region
        %s442 = ssub.s32 %s13, 2
        // Predicated region
        $region45: #{gcn_forward.1} parent=43 // pred_check
          %p443 = pneg %p150
        $region46: #{gcn_forward.1} parent=43 // pred_check_branch
          %445 = sbr.rel (%p443) target = $region48
        $region47: #{gcn_forward.1} parent=43 // pred_region
          %s446 = sand.u32 %s135, 1
          %s447 = scalar_lea.sflag [#allocation3], %s446
          %s448 = sand.u32 %s135, 1
          %s449 = smul.addr %s448, 16
          %s450 = scalar_lea.vmem [#allocation2], %s449
          %451 = dma.done %s447, 256
        $region48: #{gcn_forward.1} parent=43 // pred_fallthru
          _
      $region44: #{gcn_forward.1} parent=5 // pred_fallthru
        _
    $region6: #{gcn_forward.1} parent=1 // loop_footer
      %s17 = sadd.s32 1, %s13
    $region7: #{gcn_forward.1} parent=1 // loop_footer_branch
      %12 = sbr.rel target = $region3
    $region8: #{gcn_forward.1} parent=1 // loop_exit
      _
    %452 = vsyncpa [#allocation3], 1
    %s453 = scalar_lea.sflag [#allocation3], 1
    %454 = vsyncpa %s453, 1

</llo_original>
